<compile_context>
chip_gen: v7x
topology: tpu7x:2x2x1
jax: 0.10.0
libtpu: 0.0.40
codegen_flags: <defaults>
</compile_context>

<pallas_src>
import math

import numpy as np
import jax
import jax.numpy as jnp
from jax.experimental import pallas as pl
from jax.experimental.pallas import tpu as pltpu


def _host_pos_table(H, W, num_pos_feats, temperature, normalize, scale,
                    h_init, w_init):
    """Full (H, W, 2*num_pos_feats) sine/cosine table, float64 on host.

    Mirrors the PyTorch generate_position_embedding() exactly (cumsum of a
    ones-mask == 1-based coordinates; normalization denominators are the full
    H_init / W_init even when the forward later slices to (H, W))."""
    y = np.broadcast_to(
        np.arange(1, h_init + 1, dtype=np.float64)[:, None], (h_init, w_init))
    x = np.broadcast_to(
        np.arange(1, w_init + 1, dtype=np.float64)[None, :], (h_init, w_init))
    y = np.array(y)
    x = np.array(x)
    if normalize:
        eps = 1e-6
        y = (y - 0.5) / (float(h_init) + eps) * scale
        x = (x - 0.5) / (float(w_init) + eps) * scale

    dim = np.arange(num_pos_feats, dtype=np.float64)
    dim_t = np.asarray(temperature, np.float64) ** (
        2.0 * np.floor(dim / 2.0) / float(num_pos_feats))

    pos_y = y[:, :, None] / dim_t                      # (H_init, W_init, F)
    pos_x = x[:, :, None] / dim_t

    def interleave(p):
        s = np.sin(p[..., 0::2])
        c = np.cos(p[..., 1::2])
        return np.stack((s, c), axis=-1).reshape(p.shape[:-1] + (-1,))

    pos = np.concatenate((interleave(pos_y), interleave(pos_x)), axis=-1)
    return np.ascontiguousarray(pos[:H, :W, :]).astype(np.float32)  # (H, W, C)


def _choose_tiles(B_out, H, WCp, itemsize=4, target_bytes=2 << 20):
    """Pick (batch_block, h_block) for the (B_out, H, WCp) output.

    Keeps each block <= target_bytes (double-buffered output + table then sits
    well under every generation's scoped-VMEM default) and collapses to a
    single grid step for small problems so no per-step overhead is paid."""
    row_bytes = WCp * itemsize
    slab_bytes = H * row_bytes                 # one batch element
    total_bytes = B_out * slab_bytes

    # Small problem: one grid step writes everything.
    if total_bytes <= 2 * target_bytes:
        return B_out, H

    if slab_bytes <= target_bytes:
        # Tile over batch only; bb must divide B_out exactly.
        bb = min(B_out, max(1, target_bytes // slab_bytes))
        while B_out % bb:
            bb -= 1
        return bb, H

    # One batch element per step; tile H.  The sublane dim of the block (th)
    # must be a multiple of 8 or equal to H.
    smallest_legal = None
    for th in range(8 * (H // 8), 0, -8):
        if H % th == 0:
            if th * row_bytes <= target_bytes:
                return 1, th                   # largest fitting mult-of-8 divisor
            smallest_legal = th
    if smallest_legal is not None:
        return 1, smallest_legal               # over budget, but smallest legal tile
    return 1, H                                # H has no mult-of-8 divisor


def _repeat_kernel(tab_ref, o_ref):
    # tab_ref: (th, WCp) precomputed table tile; o_ref: (bb, th, WCp) output
    # block.  Pure broadcast across the batch block — no compute.
    o_ref[...] = jnp.broadcast_to(tab_ref[...][None, :, :], o_ref.shape)


def position_embedding_sine(x, *, num_pos_feats=32, temperature=10000.0,
                            normalize=False, scale=None,
                            input_size=(1, 16, 16)):
    """Forward pass of PositionEmbeddingSine.

    x: array whose first three dims are (B, H, W) (values unused, as in torch).
    Returns pos of shape (B * B_init, H, W, 2 * num_pos_feats), float32.
    """
    if scale is not None and not normalize:
        raise ValueError("normalize should be True if scale is passed")
    if scale is None:
        scale = 2 * math.pi

    B, H, W = x.shape[:3]
    B_init, H_init, W_init = input_size
    assert H <= H_init and W <= W_init, "forward slices the precomputed grid"

    B_out = B * B_init
    C = 2 * num_pos_feats
    WC = W * C
    WCp = ((WC + 127) // 128) * 128            # lane-dense (multiple of 128)

    # Trace-time constant table, flattened lane-dense and zero-padded.
    tab = _host_pos_table(H, W, num_pos_feats, temperature, normalize, scale,
                          H_init, W_init).reshape(H, WC)
    if WCp != WC:
        tab = np.pad(tab, ((0, 0), (0, WCp - WC)))
    tab_dev = jnp.asarray(tab)                 # (H, WCp) float32

    bb, th = _choose_tiles(B_out, H, WCp)

    out3 = pl.pallas_call(
        _repeat_kernel,
        out_shape=jax.ShapeDtypeStruct((B_out, H, WCp), jnp.float32),
        grid_spec=pltpu.PrefetchScalarGridSpec(
            num_scalar_prefetch=0,
            grid=(B_out // bb, H // th),
            in_specs=[pl.BlockSpec((th, WCp), lambda b, hi: (hi, 0))],
            out_specs=pl.BlockSpec((bb, th, WCp), lambda b, hi: (b, hi, 0)),
        ),
        compiler_params=pltpu.CompilerParams(
            dimension_semantics=("parallel", "parallel"),
            # Safe on all generations (physical >= 64 MiB everywhere); gives
            # headroom over v5e's 16 MiB scoped default for larger shapes.
            vmem_limit_bytes=32 * 1024 * 1024),
    )(tab_dev)

    if WCp != WC:
        out3 = out3[..., :WC]
    return out3.reshape(B_out, H, W, C)


def _reference(x, *, num_pos_feats=32, temperature=10000.0, normalize=False,
               scale=None, input_size=(1, 16, 16)):
    """Pure-JAX reference mirroring the PyTorch code exactly (f32 throughout)."""
    if scale is None:
        scale = 2 * math.pi
    B_init, H_init, W_init = input_size
    y_embed = jnp.broadcast_to(
        jnp.arange(1, H_init + 1, dtype=jnp.float32)[None, :, None],
        (B_init, H_init, W_init))
    x_embed = jnp.broadcast_to(
        jnp.arange(1, W_init + 1, dtype=jnp.float32)[None, None, :],
        (B_init, H_init, W_init))
    if normalize:
        eps = 1e-6
        y_embed = (y_embed - 0.5) / (y_embed[:, -1:, :] + eps) * scale
        x_embed = (x_embed - 0.5) / (x_embed[:, :, -1:] + eps) * scale
    dim_t = jnp.arange(num_pos_feats, dtype=jnp.float32)
    dim_t = temperature ** (2 * (dim_t // 2) / num_pos_feats)
    pos_x = x_embed[:, :, :, None] / dim_t
    pos_y = y_embed[:, :, :, None] / dim_t
    pos_x = jnp.stack((jnp.sin(pos_x[:, :, :, 0::2]),
                       jnp.cos(pos_x[:, :, :, 1::2])), axis=4).reshape(
                           B_init, H_init, W_init, -1)
    pos_y = jnp.stack((jnp.sin(pos_y[:, :, :, 0::2]),
                       jnp.cos(pos_y[:, :, :, 1::2])), axis=4).reshape(
                           B_init, H_init, W_init, -1)
    pos = jnp.concatenate((pos_y, pos_x), axis=3)
    B, H, W = x.shape[:3]
    return jnp.tile(pos[:, :H, :W, :], (B, 1, 1, 1))


if __name__ == "__main__":
    key = jax.random.PRNGKey(0)
    # x: (B, H, W, C_in) channels-last; only shape[:3] matters for this module.
    x = jax.random.normal(key, (2, 16, 16, 4), dtype=jnp.float32)

    num_pos_feats = 32
    input_size = (1, 16, 16)

    for normalize in (False, True):
        out = position_embedding_sine(
            x, num_pos_feats=num_pos_feats, temperature=10000.0,
            normalize=normalize, input_size=input_size)
        out = jax.block_until_ready(out)

        ref = _reference(x, num_pos_feats=num_pos_feats, temperature=10000.0,
                         normalize=normalize, input_size=input_size)

        assert out.shape == (2 * input_size[0], 16, 16, 2 * num_pos_feats)
        err = float(jnp.max(jnp.abs(out - ref)))
        assert jnp.allclose(out, ref, atol=2e-5, rtol=1e-5), err

    print("KERNEL_OK")
</pallas_src>

<mosaic_0001>
module attributes {stable_mosaic.version = 11 : i64} {
  func.func @_repeat_kernel(%arg0: i32, %arg1: i32, %arg2: memref<16x1024xf32, #tpu.memory_space<vmem>>, %arg3: memref<2x16x1024xf32, #tpu.memory_space<vmem>>) attributes {dimension_semantics = [#tpu.dimension_semantics<parallel>, #tpu.dimension_semantics<parallel>], iteration_bounds = array<i64: 1, 1>, scalar_prefetch = 0 : i64, scratch_operands = 0 : i64, tpu.core_type = #tpu.core_type<tc>, window_params = [{transform_indices = @transform_0, window_bounds = array<i64: 16, 1024>}, {transform_indices = @transform_1, window_bounds = array<i64: 2, 16, 1024>}]} {
    %c0 = arith.constant 0 : index
    %c0_0 = arith.constant 0 : index
    %0 = vector.load %arg2[%c0, %c0_0] : memref<16x1024xf32, #tpu.memory_space<vmem>>, vector<16x1024xf32>
    %1 = vector.shape_cast %0 : vector<16x1024xf32> to vector<1x16x1024xf32>
    %2 = vector.shape_cast %1 : vector<1x16x1024xf32> to vector<1x16x1024xf32>
    %3 = vector.broadcast %2 : vector<1x16x1024xf32> to vector<2x16x1024xf32>
    %c0_1 = arith.constant 0 : index
    %c0_2 = arith.constant 0 : index
    %c0_3 = arith.constant 0 : index
    %4 = vector.load %arg3[%c0_1, %c0_2, %c0_3] : memref<2x16x1024xf32, #tpu.memory_space<vmem>>, vector<2x16x1024xf32>
    tpu.vector_store %arg3[%c0_1, %c0_2, %c0_3], %3 {strides = array<i32>} : memref<2x16x1024xf32, #tpu.memory_space<vmem>>, vector<2x16x1024xf32>,
    return
  }
  func.func @transform_0(%arg0: i32, %arg1: i32) -> (i32, i32) {
    %c0_i32 = arith.constant 0 : i32
    %c0_i32_0 = arith.constant 0 : i32
    return %arg1, %c0_i32 : i32, i32
  }
  func.func @transform_1(%arg0: i32, %arg1: i32) -> (i32, i32, i32) {
    %c0_i32 = arith.constant 0 : i32
    %c0_i32_0 = arith.constant 0 : i32
    return %arg0, %arg1, %c0_i32 : i32, i32, i32
  }
}

</mosaic_0001>

<llo_original>
// kernel: tpu_custom_call.1
$region0: #{tpu_custom_call.1}
  #allocation0 [shape = 'u32[]', space=smem, size = 0x4, offset = 0x4, fixed_abs, tag = 'smem constant byte address 0x4 - core index']
  #allocation1 [shape = 'u32[144,128]{1,0:T(1,128)}', space=vmem, size = 0x12000, scoped, tag = 'internal scratch']
  %s0 = inlined_call_operand.hbm [shape: f32[16,1024], index: 0, kind: input, shape index: {}]
  %s1 = inlined_call_operand.hbm [shape: f32[2,16,1024], index: 1, kind: output, shape index: {}]
  %s2 = sld [smem:[#allocation0]]
  $region18: #{tpu_custom_call.1} parent=0
    _
  %s4 = ssub.s32 1, %s2
  %s5 = scalar_select 0, %s4, %s2
  $region1: #{tpu_custom_call.1} parent=0
    #allocation2 [shape = 'u8[65536]{0}', space=vmem, size = 0x10000, scoped, tag = 'input window, operand 0, single buffered']
    #allocation3 [shape = 's32[1]{0}', space=sflag, size = 0x4, scoped, tag = 'scoped memory for tpu_custom_call.1']
    #allocation4 [shape = 's32[1]{0}', space=sflag, size = 0x4, scoped, tag = 'scoped memory for tpu_custom_call.1']
    #allocation5 [shape = 'u8[131072]{0}', space=vmem, size = 0x20000, scoped, tag = 'output window, operand 0, single buffered']
    %6 = vsyncpa [#allocation3], 0
    %7 = vsyncpa [#allocation4], 0
    // Predicated region
    $region2: #{tpu_custom_call.1} parent=1 // pred_check
      _
    $region3: #{tpu_custom_call.1} parent=1 // pred_check_branch
      %9 = sbr.rel (0) target = $region5
    $region4: #{tpu_custom_call.1} parent=1 // pred_region
      %s11 = ssub.s32 2048, 2048
      %12 = vsyncadd [#allocation3], %s11
      %s13 = sshll.u32 [#allocation2], 4
      %s14 = int_to_ptr.vmem [resolvable:$true] %s13
      %19 = dma.hbm_to_vmem [thread:$0]  %s0, 2048, %s14, [#allocation3], 1024, 1024, 64
    $region5: #{tpu_custom_call.1} parent=1 // pred_fallthru
      _
    // Predicated region
    $region6: #{tpu_custom_call.1} parent=1 // pred_check
      _
    $region7: #{tpu_custom_call.1} parent=1 // pred_check_branch
      %21 = sbr.rel (0) target = $region9
    $region8: #{tpu_custom_call.1} parent=1 // pred_region
      %22 = dma.done [#allocation3], 2048
    $region9: #{tpu_custom_call.1} parent=1 // pred_fallthru
      _
    %v23 = vld [vmem:[#allocation2] sm:$0xff]
    %v24 = vld [vmem:[#allocation2 + $0x8] sm:$0xff]
    %v25 = vld [vmem:[#allocation2 + $0x10] sm:$0xff]
    %v26 = vld [vmem:[#allocation2 + $0x18] sm:$0xff]
    %v27 = vld [vmem:[#allocation2 + $0x20] sm:$0xff]
    %v28 = vld [vmem:[#allocation2 + $0x28] sm:$0xff]
    %v29 = vld [vmem:[#allocation2 + $0x30] sm:$0xff]
    %v30 = vld [vmem:[#allocation2 + $0x38] sm:$0xff]
    %v31 = vld [vmem:[#allocation2 + $0x40] sm:$0xff]
    %v32 = vld [vmem:[#allocation2 + $0x48] sm:$0xff]
    %v33 = vld [vmem:[#allocation2 + $0x50] sm:$0xff]
    %v34 = vld [vmem:[#allocation2 + $0x58] sm:$0xff]
    %v35 = vld [vmem:[#allocation2 + $0x60] sm:$0xff]
    %v36 = vld [vmem:[#allocation2 + $0x68] sm:$0xff]
    %v37 = vld [vmem:[#allocation2 + $0x70] sm:$0xff]
    %v38 = vld [vmem:[#allocation2 + $0x78] sm:$0xff]
    %39 = vst [vmem:[#allocation5] sm:$0xff] %v23
    %40 = vst [vmem:[#allocation5 + $0x8] sm:$0xff] %v24
    %41 = vst [vmem:[#allocation5 + $0x10] sm:$0xff] %v25
    %42 = vst [vmem:[#allocation5 + $0x18] sm:$0xff] %v26
    %43 = vst [vmem:[#allocation5 + $0x20] sm:$0xff] %v27
    %44 = vst [vmem:[#allocation5 + $0x28] sm:$0xff] %v28
    %45 = vst [vmem:[#allocation5 + $0x30] sm:$0xff] %v29
    %46 = vst [vmem:[#allocation5 + $0x38] sm:$0xff] %v30
    %47 = vst [vmem:[#allocation5 + $0x40] sm:$0xff] %v31
    %48 = vst [vmem:[#allocation5 + $0x48] sm:$0xff] %v32
    %49 = vst [vmem:[#allocation5 + $0x50] sm:$0xff] %v33
    %50 = vst [vmem:[#allocation5 + $0x58] sm:$0xff] %v34
    %51 = vst [vmem:[#allocation5 + $0x60] sm:$0xff] %v35
    %52 = vst [vmem:[#allocation5 + $0x68] sm:$0xff] %v36
    %53 = vst [vmem:[#allocation5 + $0x70] sm:$0xff] %v37
    %54 = vst [vmem:[#allocation5 + $0x78] sm:$0xff] %v38
    %55 = vst [vmem:[#allocation5 + $0x80] sm:$0xff] %v23
    %56 = vst [vmem:[#allocation5 + $0x88] sm:$0xff] %v24
    %57 = vst [vmem:[#allocation5 + $0x90] sm:$0xff] %v25
    %58 = vst [vmem:[#allocation5 + $0x98] sm:$0xff] %v26
    %59 = vst [vmem:[#allocation5 + $0xa0] sm:$0xff] %v27
    %60 = vst [vmem:[#allocation5 + $0xa8] sm:$0xff] %v28
    %61 = vst [vmem:[#allocation5 + $0xb0] sm:$0xff] %v29
    %62 = vst [vmem:[#allocation5 + $0xb8] sm:$0xff] %v30
    %63 = vst [vmem:[#allocation5 + $0xc0] sm:$0xff] %v31
    %64 = vst [vmem:[#allocation5 + $0xc8] sm:$0xff] %v32
    %65 = vst [vmem:[#allocation5 + $0xd0] sm:$0xff] %v33
    %66 = vst [vmem:[#allocation5 + $0xd8] sm:$0xff] %v34
    %67 = vst [vmem:[#allocation5 + $0xe0] sm:$0xff] %v35
    %68 = vst [vmem:[#allocation5 + $0xe8] sm:$0xff] %v36
    %69 = vst [vmem:[#allocation5 + $0xf0] sm:$0xff] %v37
    %70 = vst [vmem:[#allocation5 + $0xf8] sm:$0xff] %v38
    // Predicated region
    $region10: #{tpu_custom_call.1} parent=1 // pred_check
      _
    $region11: #{tpu_custom_call.1} parent=1 // pred_check_branch
      %72 = sbr.rel (0) target = $region13
    $region12: #{tpu_custom_call.1} parent=1 // pred_region
      %s74 = ssub.s32 4096, 4096
      %75 = vsyncadd [#allocation4], %s74
      %s76 = sshll.u32 [#allocation5], 4
      %s77 = int_to_ptr.vmem [resolvable:$true] %s76
      %82 = dma.vmem_to_hbm [thread:$0]  %s77, 4096, %s1, [#allocation4], 1024, 1024, 64
    $region13: #{tpu_custom_call.1} parent=1 // pred_fallthru
      _
    // Predicated region
    $region14: #{tpu_custom_call.1} parent=1 // pred_check
      _
    $region15: #{tpu_custom_call.1} parent=1 // pred_check_branch
      %84 = sbr.rel (0) target = $region17
    $region16: #{tpu_custom_call.1} parent=1 // pred_region
      %85 = dma.done [#allocation4], 4096
    $region17: #{tpu_custom_call.1} parent=1 // pred_fallthru
      _
    %86 = vsyncpa [#allocation3], 1
    %87 = vsyncpa [#allocation4], 1

</llo_original>
